<compile_context>
chip_gen: v5e
topology: v5e:2x2
jax: 0.10.0
libtpu: 0.0.40
codegen_flags: <defaults>
</compile_context>

<pallas_src>
import math

import jax
import jax.numpy as jnp
from jax import lax
from jax.experimental import pallas as pl
from jax.experimental.pallas import tpu as pltpu


def _round_up(x, m):
    return (x + m - 1) // m * m


def qnetwork_kernel(x_ref, w1_ref, b1_ref, w2_ref, b2_ref, w3_ref, b3_ref, o_ref):
    """Fused 3-layer MLP, feature-major compute (batch on the lane axis).

    x_ref : (TILE_B, S)   batch-major input tile, straight from HBM (S = 30)
    w1_ref: (H1p, S)      torch-style (out, in); out padded to a multiple of 8
    b1_ref: (H1p, 1)
    w2_ref: (H2p, H1p)
    b2_ref: (H2p, 1)
    w3_ref: (A, H2p)      last layer keeps the exact action_size out dim
    b3_ref: (A, 1)
    o_ref : (A, TILE_B)   feature-major output (lane-dense: batch on lanes)
    """
    x = x_ref[...]

    # h1[f, b] = sum_s w1[f, s] * x[b, s]
    # Contraction over both operands' last dim: the batch-major -> feature-major
    # relayout is fused into the MXU feed instead of a separate HBM pass.
    h1 = lax.dot_general(
        w1_ref[...], x, (((1,), (1,)), ((), ())),
        preferred_element_type=jnp.float32,
    )
    h1 = jnp.maximum(h1 + b1_ref[...], 0.0)

    h2 = jnp.dot(w2_ref[...], h1, preferred_element_type=jnp.float32)
    h2 = jnp.maximum(h2 + b2_ref[...], 0.0)

    out = jnp.dot(w3_ref[...], h2, preferred_element_type=jnp.float32) + b3_ref[...]
    o_ref[...] = out.astype(o_ref.dtype)


def init_linear(key, in_features, out_features):
    """torch.nn.Linear default init: U[-1/sqrt(fan_in), +1/sqrt(fan_in)].
    W stored torch-style as (out, in); b as (out,)."""
    kw, kb = jax.random.split(key)
    bound = 1.0 / math.sqrt(in_features)
    w = jax.random.uniform(kw, (out_features, in_features), jnp.float32, -bound, bound)
    b = jax.random.uniform(kb, (out_features,), jnp.float32, -bound, bound)
    return w, b


def prepare_params(params):
    """One-time preprocessing (free at call time):
       - zero-pad hidden feature dims to multiples of 8 (sublane-friendly),
       - keep layer-0 in_features (must match the raw input's last dim) and
         the final out_features (exact output shape) unpadded,
       - reshape biases to (out_pad, 1) so they broadcast along the lane axis.
    """
    n = len(params)
    prepared = []
    for idx, (w, b) in enumerate(params):
        out_f, in_f = w.shape
        in_p = in_f if idx == 0 else _round_up(in_f, 8)
        out_p = out_f if idx == n - 1 else _round_up(out_f, 8)
        w_p = jnp.zeros((out_p, in_p), jnp.float32).at[:out_f, :in_f].set(w)
        b_p = jnp.zeros((out_p, 1), jnp.float32).at[:out_f, 0].set(b)
        prepared.append((w_p, b_p))
    return prepared


def qnetwork_forward(state, prepared_params, *, tile_b=4096, transpose_out=True):
    """state: (B, state_size) float32 (batch-major, exactly as PyTorch sees it).
    prepared_params: output of prepare_params.

    Returns (B, action_size) float32 (PyTorch layout) by default, or the
    kernel-native feature-major (action_size, B) if transpose_out=False.
    """
    (w1, b1), (w2, b2), (w3, b3) = prepared_params
    B, state_size = state.shape
    action_size = w3.shape[0]
    if state.dtype != jnp.float32:
        state = state.astype(jnp.float32)

    # tile_b: multiple of 256 (full MXU N-width on v6e/v7x), large to amortize
    # per-grid-step overhead, capped so there are >= 2 grid steps when the
    # batch allows it (v7x megacore via dimension_semantics=("parallel",)).
    tile_b = _round_up(max(int(tile_b), 256), 256)
    tile_b = min(tile_b, 8192)
    half_b = _round_up(-(-B // 2), 256)          # ceil(B/2) rounded up to 256
    tile_b = max(256, min(tile_b, half_b))
    num_tiles = -(-B // tile_b)                  # cdiv; edge tile is masked by Pallas

    # Weights/biases pinned to block (0, 0) for every grid step -> fetched once,
    # VMEM-resident (Pallas elides the re-DMA when the block index is unchanged).
    resident = lambda arr: pl.BlockSpec(arr.shape, lambda i: (0, 0))

    out_fm = pl.pallas_call(
        qnetwork_kernel,
        out_shape=jax.ShapeDtypeStruct((action_size, B), jnp.float32),
        grid=(num_tiles,),
        in_specs=[
            # Raw batch-major input streamed over the batch (no wrapper relayout).
            pl.BlockSpec((tile_b, state_size), lambda i: (i, 0)),
            resident(w1), resident(b1),
            resident(w2), resident(b2),
            resident(w3), resident(b3),
        ],
        # Lane-dense output: batch on the 128-wide lane axis.
        out_specs=pl.BlockSpec((action_size, tile_b), lambda i: (0, i)),
        compiler_params=pltpu.CompilerParams(
            dimension_semantics=("parallel",),   # shard batch tiles across TCs on v7x
        ),
    )(state, w1, b1, w2, b2, w3, b3)

    if transpose_out:
        # Tiny (2, B) -> (B, 2) flip to match the PyTorch output layout.
        return out_fm.T
    return out_fm


def reference_forward(state, params):
    (w1, b1), (w2, b2), (w3, b3) = params
    h1 = jnp.maximum(state @ w1.T + b1, 0.0)
    h2 = jnp.maximum(h1 @ w2.T + b2, 0.0)
    return h2 @ w3.T + b3


# TODO(synk): do_optimization_step (gather + MSE loss + backward + optimizer
# update) is a training-loop utility, not part of the forward pass, so it is
# not translated.

if __name__ == "__main__":
    key = jax.random.PRNGKey(0)
    k_in, k1, k2, k3 = jax.random.split(key, 4)

    batch = 512   # resolves to two 256-wide batch tiles -> exercises the pipelined grid
    state_size, h1_dim, h2_dim, action_size = 30, 10, 5, 2

    state = jax.random.normal(k_in, (batch, state_size), jnp.float32)
    params = [
        init_linear(k1, state_size, h1_dim),
        init_linear(k2, h1_dim, h2_dim),
        init_linear(k3, h2_dim, action_size),
    ]
    prepared = prepare_params(params)

    out = qnetwork_forward(state, prepared)
    out = jax.block_until_ready(out)

    ref = reference_forward(state, params)
    assert out.shape == (batch, action_size)
    assert jnp.allclose(out, ref, atol=1e-4, rtol=1e-4), \
        f"max abs err = {jnp.max(jnp.abs(out - ref))}"

    print("KERNEL_OK")
</pallas_src>

<mosaic_0001>
module attributes {stable_mosaic.version = 11 : i64} {
  func.func @qnetwork_kernel(%arg0: i32, %arg1: memref<256x30xf32, #tpu.memory_space<vmem>>, %arg2: memref<16x30xf32, #tpu.memory_space<vmem>>, %arg3: memref<16x1xf32, #tpu.memory_space<vmem>>, %arg4: memref<8x16xf32, #tpu.memory_space<vmem>>, %arg5: memref<8x1xf32, #tpu.memory_space<vmem>>, %arg6: memref<2x8xf32, #tpu.memory_space<vmem>>, %arg7: memref<2x1xf32, #tpu.memory_space<vmem>>, %arg8: memref<2x256xf32, #tpu.memory_space<vmem>>) attributes {dimension_semantics = [#tpu.dimension_semantics<parallel>], iteration_bounds = array<i64: 2>, scalar_prefetch = 0 : i64, scratch_operands = 0 : i64, tpu.core_type = #tpu.core_type<tc>, window_params = [{transform_indices = @transform_0, window_bounds = array<i64: 256, 30>}, {pipeline_mode = #tpu.pipeline_mode<synchronous>, transform_indices = @transform_1, window_bounds = array<i64: 16, 30>}, {pipeline_mode = #tpu.pipeline_mode<synchronous>, transform_indices = @transform_2, window_bounds = array<i64: 16, 1>}, {pipeline_mode = #tpu.pipeline_mode<synchronous>, transform_indices = @transform_3, window_bounds = array<i64: 8, 16>}, {pipeline_mode = #tpu.pipeline_mode<synchronous>, transform_indices = @transform_4, window_bounds = array<i64: 8, 1>}, {pipeline_mode = #tpu.pipeline_mode<synchronous>, transform_indices = @transform_5, window_bounds = array<i64: 2, 8>}, {pipeline_mode = #tpu.pipeline_mode<synchronous>, transform_indices = @transform_6, window_bounds = array<i64: 2, 1>}, {transform_indices = @transform_7, window_bounds = array<i64: 2, 256>}]} {
    %c0 = arith.constant 0 : index
    %c0_0 = arith.constant 0 : index
    %0 = vector.load %arg1[%c0, %c0_0] : memref<256x30xf32, #tpu.memory_space<vmem>>, vector<256x30xf32>
    %c0_1 = arith.constant 0 : index
    %c0_2 = arith.constant 0 : index
    %1 = vector.load %arg2[%c0_1, %c0_2] : memref<16x30xf32, #tpu.memory_space<vmem>>, vector<16x30xf32>
    %cst = arith.constant dense<0.000000e+00> : vector<16x256xf32>
    %2 = tpu.matmul %1, %0, %cst {dimension_numbers = #tpu.dot_dimension_numbers<[1], [1], [0], [0], [0, 0, 1, 0], [], []>} : vector<16x30xf32>, vector<256x30xf32>, vector<16x256xf32> -> vector<16x256xf32>
    %c0_3 = arith.constant 0 : index
    %c0_4 = arith.constant 0 : index
    %3 = vector.load %arg3[%c0_3, %c0_4] : memref<16x1xf32, #tpu.memory_space<vmem>>, vector<16x1xf32>
    %4 = vector.broadcast %3 : vector<16x1xf32> to vector<16x256xf32>
    %5 = arith.addf %2, %4 : vector<16x256xf32>
    %cst_5 = arith.constant 0.000000e+00 : f32
    %6 = vector.broadcast %cst_5 : f32 to vector<16x256xf32>
    %7 = arith.maximumf %5, %6 : vector<16x256xf32>
    %c0_6 = arith.constant 0 : index
    %c0_7 = arith.constant 0 : index
    %8 = vector.load %arg4[%c0_6, %c0_7] : memref<8x16xf32, #tpu.memory_space<vmem>>, vector<8x16xf32>
    %cst_8 = arith.constant dense<0.000000e+00> : vector<8x256xf32>
    %9 = tpu.matmul %8, %7, %cst_8 {dimension_numbers = #tpu.dot_dimension_numbers<[1], [0], [0], [1], [0, 0, 1, 1], [], []>} : vector<8x16xf32>, vector<16x256xf32>, vector<8x256xf32> -> vector<8x256xf32>
    %c0_9 = arith.constant 0 : index
    %c0_10 = arith.constant 0 : index
    %10 = vector.load %arg5[%c0_9, %c0_10] : memref<8x1xf32, #tpu.memory_space<vmem>>, vector<8x1xf32>
    %11 = vector.broadcast %10 : vector<8x1xf32> to vector<8x256xf32>
    %12 = arith.addf %9, %11 : vector<8x256xf32>
    %cst_11 = arith.constant 0.000000e+00 : f32
    %13 = vector.broadcast %cst_11 : f32 to vector<8x256xf32>
    %14 = arith.maximumf %12, %13 : vector<8x256xf32>
    %c0_12 = arith.constant 0 : index
    %c0_13 = arith.constant 0 : index
    %15 = vector.load %arg6[%c0_12, %c0_13] : memref<2x8xf32, #tpu.memory_space<vmem>>, vector<2x8xf32>
    %cst_14 = arith.constant dense<0.000000e+00> : vector<2x256xf32>
    %16 = tpu.matmul %15, %14, %cst_14 {dimension_numbers = #tpu.dot_dimension_numbers<[1], [0], [0], [1], [0, 0, 1, 1], [], []>} : vector<2x8xf32>, vector<8x256xf32>, vector<2x256xf32> -> vector<2x256xf32>
    %c0_15 = arith.constant 0 : index
    %c0_16 = arith.constant 0 : index
    %17 = vector.load %arg7[%c0_15, %c0_16] : memref<2x1xf32, #tpu.memory_space<vmem>>, vector<2x1xf32>
    %18 = vector.broadcast %17 : vector<2x1xf32> to vector<2x256xf32>
    %19 = arith.addf %16, %18 : vector<2x256xf32>
    %c0_17 = arith.constant 0 : index
    %c0_18 = arith.constant 0 : index
    %20 = vector.load %arg8[%c0_17, %c0_18] : memref<2x256xf32, #tpu.memory_space<vmem>>, vector<2x256xf32>
    tpu.vector_store %arg8[%c0_17, %c0_18], %19 {strides = array<i32>} : memref<2x256xf32, #tpu.memory_space<vmem>>, vector<2x256xf32>,
    return
  }
  func.func @transform_0(%arg0: i32) -> (i32, i32) {
    %c0_i32 = arith.constant 0 : i32
    %c0_i32_0 = arith.constant 0 : i32
    return %arg0, %c0_i32 : i32, i32
  }
  func.func @transform_1(%arg0: i32) -> (i32, i32) {
    %c0_i32 = arith.constant 0 : i32
    %c0_i32_0 = arith.constant 0 : i32
    %c0_i32_1 = arith.constant 0 : i32
    return %c0_i32, %c0_i32_0 : i32, i32
  }
  func.func @transform_2(%arg0: i32) -> (i32, i32) {
    %c0_i32 = arith.constant 0 : i32
    %c0_i32_0 = arith.constant 0 : i32
    %c0_i32_1 = arith.constant 0 : i32
    return %c0_i32, %c0_i32_0 : i32, i32
  }
  func.func @transform_3(%arg0: i32) -> (i32, i32) {
    %c0_i32 = arith.constant 0 : i32
    %c0_i32_0 = arith.constant 0 : i32
    %c0_i32_1 = arith.constant 0 : i32
    return %c0_i32, %c0_i32_0 : i32, i32
  }
  func.func @transform_4(%arg0: i32) -> (i32, i32) {
    %c0_i32 = arith.constant 0 : i32
    %c0_i32_0 = arith.constant 0 : i32
    %c0_i32_1 = arith.constant 0 : i32
    return %c0_i32, %c0_i32_0 : i32, i32
  }
  func.func @transform_5(%arg0: i32) -> (i32, i32) {
    %c0_i32 = arith.constant 0 : i32
    %c0_i32_0 = arith.constant 0 : i32
    %c0_i32_1 = arith.constant 0 : i32
    return %c0_i32, %c0_i32_0 : i32, i32
  }
  func.func @transform_6(%arg0: i32) -> (i32, i32) {
    %c0_i32 = arith.constant 0 : i32
    %c0_i32_0 = arith.constant 0 : i32
    %c0_i32_1 = arith.constant 0 : i32
    return %c0_i32, %c0_i32_0 : i32, i32
  }
  func.func @transform_7(%arg0: i32) -> (i32, i32) {
    %c0_i32 = arith.constant 0 : i32
    %c0_i32_0 = arith.constant 0 : i32
    return %c0_i32, %arg0 : i32, i32
  }
}

</mosaic_0001>

<llo_original>
// kernel: tpu_custom_call.1
$region0: #{tpu_custom_call.1}
  #allocation0 [shape = 'u32[]', space=smem, size = 0x4, offset = 0x4, fixed_abs, tag = 'smem constant byte address 0x4 - core index']
  #allocation1 [shape = 'u32[72,128]{1,0:T(1,128)}', space=vmem, size = 0x9000, scoped, tag = 'internal scratch']
  %s0 = inlined_call_operand.vmem [shape: f32[512,30], index: 0, kind: input, shape index: {}]
  %s1 = inlined_call_operand.vmem [shape: f32[16,30], index: 1, kind: input, shape index: {}]
  %s2 = inlined_call_operand.vmem [shape: f32[16,1], index: 2, kind: input, shape index: {}]
  %s3 = inlined_call_operand.vmem [shape: f32[8,16], index: 3, kind: input, shape index: {}]
  %s4 = inlined_call_operand.vmem [shape: f32[8,1], index: 4, kind: input, shape index: {}]
  %s5 = inlined_call_operand.vmem [shape: f32[2,8], index: 5, kind: input, shape index: {}]
  %s6 = inlined_call_operand.vmem [shape: f32[2,1], index: 6, kind: input, shape index: {}]
  %s7 = inlined_call_operand.hbm [shape: f32[2,512], index: 7, kind: output, shape index: {}]
  %s8 = sld [smem:[#allocation0]]
  $region61: #{tpu_custom_call.1} parent=0
    _
  %s10 = ssub.s32 1, %s8
  %s11 = scalar_select 0, %s10, %s8
  $region1: #{tpu_custom_call.1} parent=0
    #allocation2 [shape = 'u8[4096]{0}', space=vmem, size = 0x1000, scoped, tag = 'output window, operand 0']
    #allocation3 [shape = 's32[2]{0}', space=sflag, size = 0x8, scoped, tag = 'scoped memory for tpu_custom_call.1']
    %12 = vsyncpa [#allocation3], 0
    %s13 = scalar_lea.sflag [#allocation3], 1
    %14 = vsyncpa %s13, 0
    loop: start=0, step=1, limit=4
    $region2: #{tpu_custom_call.1} parent=1 // loop_pre_header
      _
    $region3: #{tpu_custom_call.1} parent=1 // loop_header
      %s16 = sphi 0, %s20
      %p17 = scmp.ge.s32.totalorder %s16, 4
      %s26 = sphi 0, %s28
      %s29 = sphi 0, %s26
      %s30 = sphi 0, %s29
      %s46 = sphi 0, %s30
      %s50 = sphi 0, %s50
      %s52 = sphi 0, %s50
      %s53 = sphi 0, %s52
      %s67 = sphi 0, %s53
      %s71 = sphi 0, %s71
      %s73 = sphi 0, %s71
      %s74 = sphi 0, %s73
      %s88 = sphi 0, %s74
      %s92 = sphi 0, %s92
      %s94 = sphi 0, %s92
      %s95 = sphi 0, %s94
      %s109 = sphi 0, %s95
      %s113 = sphi 0, %s113
      %s115 = sphi 0, %s113
      %s116 = sphi 0, %s115
      %s130 = sphi 0, %s116
      %s134 = sphi 0, %s134
      %s136 = sphi 0, %s134
      %s137 = sphi 0, %s136
      %s151 = sphi 0, %s137
      %s155 = sphi 0, %s155
      %s157 = sphi 0, %s155
      %s158 = sphi 0, %s157
      %s172 = sphi 0, %s158
      %s178 = sphi 0, %s180
      %s181 = sphi 0, %s178
      %s182 = sphi 0, %s181
      %s198 = sphi 0, %s182
    $region4: #{tpu_custom_call.1} parent=1 // loop_header_branch
      %19 = sbr.rel (%p17) target = $region8
    $region5: #{tpu_custom_call.1} parent=1 // loop_body
      %s21 = ssub.s32 %s16, 1
      %s22 = ssub.s32 %s16, 2
      %s23 = sadd.s32 %s16, 1
      %s24 = ssub.s32 %s16, %s23
      %p25 = scmp.eq.s32.totalorder %s24, 0
      %s27 = sadd.s32 %s26, 1
      %s28 = scalar_select %p25, %s26, %s27
      %p31 = pneg %p25
      %p32 = scmp.eq.s32.totalorder %s16, 1
      %p33 = por %p31, %p32
      %p34 = scmp.ne.s32.totalorder %s26, %s29
      %p35 = scmp.eq.s32.totalorder %s16, 0
      %p36 = por %p34, %p35
      %p37 = scmp.ne.s32.totalorder %s26, %s29
      %p38 = scmp.eq.s32.totalorder %s21, 1
      %p39 = por %p37, %p38
      %p40 = scmp.ne.s32.totalorder %s29, %s30
      %p41 = scmp.eq.s32.totalorder %s21, 0
      %p42 = por %p40, %p41
      %p43 = scmp.ne.s32.totalorder %s29, %s30
      %p44 = scmp.eq.s32.totalorder %s22, 1
      %p45 = por %p43, %p44
      %p47 = scmp.ne.s32.totalorder %s30, %s46
      %p48 = scmp.eq.s32.totalorder %s22, 0
      %p49 = por %p47, %p48
      %s51 = sadd.s32 %s50, 1
      %p54 = scmp.eq.s32.totalorder %s16, 1
      %p55 = scmp.ne.s32.totalorder %s50, %s52
      %p56 = scmp.eq.s32.totalorder %s16, 0
      %p57 = por %p55, %p56
      %p58 = scmp.ne.s32.totalorder %s50, %s52
      %p59 = scmp.eq.s32.totalorder %s21, 1
      %p60 = por %p58, %p59
      %p61 = scmp.ne.s32.totalorder %s52, %s53
      %p62 = scmp.eq.s32.totalorder %s21, 0
      %p63 = por %p61, %p62
      %p64 = scmp.ne.s32.totalorder %s52, %s53
      %p65 = scmp.eq.s32.totalorder %s22, 1
      %p66 = por %p64, %p65
      %p68 = scmp.ne.s32.totalorder %s53, %s67
      %p69 = scmp.eq.s32.totalorder %s22, 0
      %p70 = por %p68, %p69
      %s72 = sadd.s32 %s71, 1
      %p75 = scmp.eq.s32.totalorder %s16, 1
      %p76 = scmp.ne.s32.totalorder %s71, %s73
      %p77 = scmp.eq.s32.totalorder %s16, 0
      %p78 = por %p76, %p77
      %p79 = scmp.ne.s32.totalorder %s71, %s73
      %p80 = scmp.eq.s32.totalorder %s21, 1
      %p81 = por %p79, %p80
      %p82 = scmp.ne.s32.totalorder %s73, %s74
      %p83 = scmp.eq.s32.totalorder %s21, 0
      %p84 = por %p82, %p83
      %p85 = scmp.ne.s32.totalorder %s73, %s74
      %p86 = scmp.eq.s32.totalorder %s22, 1
      %p87 = por %p85, %p86
      %p89 = scmp.ne.s32.totalorder %s74, %s88
      %p90 = scmp.eq.s32.totalorder %s22, 0
      %p91 = por %p89, %p90
      %s93 = sadd.s32 %s92, 1
      %p96 = scmp.eq.s32.totalorder %s16, 1
      %p97 = scmp.ne.s32.totalorder %s92, %s94
      %p98 = scmp.eq.s32.totalorder %s16, 0
      %p99 = por %p97, %p98
      %p100 = scmp.ne.s32.totalorder %s92, %s94
      %p101 = scmp.eq.s32.totalorder %s21, 1
      %p102 = por %p100, %p101
      %p103 = scmp.ne.s32.totalorder %s94, %s95
      %p104 = scmp.eq.s32.totalorder %s21, 0
      %p105 = por %p103, %p104
      %p106 = scmp.ne.s32.totalorder %s94, %s95
      %p107 = scmp.eq.s32.totalorder %s22, 1
      %p108 = por %p106, %p107
      %p110 = scmp.ne.s32.totalorder %s95, %s109
      %p111 = scmp.eq.s32.totalorder %s22, 0
      %p112 = por %p110, %p111
      %s114 = sadd.s32 %s113, 1
      %p117 = scmp.eq.s32.totalorder %s16, 1
      %p118 = scmp.ne.s32.totalorder %s113, %s115
      %p119 = scmp.eq.s32.totalorder %s16, 0
      %p120 = por %p118, %p119
      %p121 = scmp.ne.s32.totalorder %s113, %s115
      %p122 = scmp.eq.s32.totalorder %s21, 1
      %p123 = por %p121, %p122
      %p124 = scmp.ne.s32.totalorder %s115, %s116
      %p125 = scmp.eq.s32.totalorder %s21, 0
      %p126 = por %p124, %p125
      %p127 = scmp.ne.s32.totalorder %s115, %s116
      %p128 = scmp.eq.s32.totalorder %s22, 1
      %p129 = por %p127, %p128
      %p131 = scmp.ne.s32.totalorder %s116, %s130
      %p132 = scmp.eq.s32.totalorder %s22, 0
      %p133 = por %p131, %p132
      %s135 = sadd.s32 %s134, 1
      %p138 = scmp.eq.s32.totalorder %s16, 1
      %p139 = scmp.ne.s32.totalorder %s134, %s136
      %p140 = scmp.eq.s32.totalorder %s16, 0
      %p141 = por %p139, %p140
      %p142 = scmp.ne.s32.totalorder %s134, %s136
      %p143 = scmp.eq.s32.totalorder %s21, 1
      %p144 = por %p142, %p143
      %p145 = scmp.ne.s32.totalorder %s136, %s137
      %p146 = scmp.eq.s32.totalorder %s21, 0
      %p147 = por %p145, %p146
      %p148 = scmp.ne.s32.totalorder %s136, %s137
      %p149 = scmp.eq.s32.totalorder %s22, 1
      %p150 = por %p148, %p149
      %p152 = scmp.ne.s32.totalorder %s137, %s151
      %p153 = scmp.eq.s32.totalorder %s22, 0
      %p154 = por %p152, %p153
      %s156 = sadd.s32 %s155, 1
      %p159 = scmp.eq.s32.totalorder %s16, 1
      %p160 = scmp.ne.s32.totalorder %s155, %s157
      %p161 = scmp.eq.s32.totalorder %s16, 0
      %p162 = por %p160, %p161
      %p163 = scmp.ne.s32.totalorder %s155, %s157
      %p164 = scmp.eq.s32.totalorder %s21, 1
      %p165 = por %p163, %p164
      %p166 = scmp.ne.s32.totalorder %s157, %s158
      %p167 = scmp.eq.s32.totalorder %s21, 0
      %p168 = por %p166, %p167
      %p169 = scmp.ne.s32.totalorder %s157, %s158
      %p170 = scmp.eq.s32.totalorder %s22, 1
      %p171 = por %p169, %p170
      %p173 = scmp.ne.s32.totalorder %s158, %s172
      %p174 = scmp.eq.s32.totalorder %s22, 0
      %p175 = por %p173, %p174
      %s176 = ssub.s32 %s16, %s23
      %p177 = scmp.eq.s32.totalorder %s176, 0
      %s179 = sadd.s32 %s178, 1
      %s180 = scalar_select %p177, %s178, %s179
      %p183 = pneg %p177
      %p184 = scmp.eq.s32.totalorder %s16, 1
      %p185 = por %p183, %p184
      %p186 = scmp.ne.s32.totalorder %s178, %s181
      %p187 = scmp.eq.s32.totalorder %s16, 0
      %p188 = por %p186, %p187
      %p189 = scmp.ne.s32.totalorder %s178, %s181
      %p190 = scmp.eq.s32.totalorder %s21, 1
      %p191 = por %p189, %p190
      %p192 = scmp.ne.s32.totalorder %s181, %s182
      %p193 = scmp.eq.s32.totalorder %s21, 0
      %p194 = por %p192, %p193
      %p195 = scmp.ne.s32.totalorder %s181, %s182
      %p196 = scmp.eq.s32.totalorder %s22, 1
      %p197 = por %p195, %p196
      %p199 = scmp.ne.s32.totalorder %s182, %s198
      %p200 = scmp.eq.s32.totalorder %s22, 0
      %p201 = por %p199, %p200
      %p202 = scmp.le.s32.totalorder 1, %s16
      %p203 = scmp.lt.s32.totalorder %s16, 3
      %p204 = pnand %p202, %p203
      %p205 = pneg %p204
      // Predicated region
      $region9: #{tpu_custom_call.1} parent=5 // pred_check
        _
      $region10: #{tpu_custom_call.1} parent=5 // pred_check_branch
        %207 = sbr.rel (%p204) target = $region12
      $region11: #{tpu_custom_call.1} parent=5 // pred_region
        %s208 = ssub.s32 %s16, 1
        // Predicated region
        $region13: #{tpu_custom_call.1} parent=11 // pred_check
          %p209 = pneg %p63
        $region14: #{tpu_custom_call.1} parent=11 // pred_check_branch
          %211 = sbr.rel (%p209) target = $region16
        $region15: #{tpu_custom_call.1} parent=11 // pred_region
          _
        $region16: #{tpu_custom_call.1} parent=11 // pred_fallthru
          _
        // Predicated region
        $region17: #{tpu_custom_call.1} parent=11 // pred_check
          %p212 = pneg %p84
        $region18: #{tpu_custom_call.1} parent=11 // pred_check_branch
          %214 = sbr.rel (%p212) target = $region20
        $region19: #{tpu_custom_call.1} parent=11 // pred_region
          _
        $region20: #{tpu_custom_call.1} parent=11 // pred_fallthru
          _
        // Predicated region
        $region21: #{tpu_custom_call.1} parent=11 // pred_check
          %p215 = pneg %p105
        $region22: #{tpu_custom_call.1} parent=11 // pred_check_branch
          %217 = sbr.rel (%p215) target = $region24
        $region23: #{tpu_custom_call.1} parent=11 // pred_region
          _
        $region24: #{tpu_custom_call.1} parent=11 // pred_fallthru
          _
        // Predicated region
        $region25: #{tpu_custom_call.1} parent=11 // pred_check
          %p218 = pneg %p126
        $region26: #{tpu_custom_call.1} parent=11 // pred_check_branch
          %220 = sbr.rel (%p218) target = $region28
        $region27: #{tpu_custom_call.1} parent=11 // pred_region
          _
        $region28: #{tpu_custom_call.1} parent=11 // pred_fallthru
          _
        // Predicated region
        $region29: #{tpu_custom_call.1} parent=11 // pred_check
          %p221 = pneg %p147
        $region30: #{tpu_custom_call.1} parent=11 // pred_check_branch
          %223 = sbr.rel (%p221) target = $region32
        $region31: #{tpu_custom_call.1} parent=11 // pred_region
          _
        $region32: #{tpu_custom_call.1} parent=11 // pred_fallthru
          _
        // Predicated region
        $region33: #{tpu_custom_call.1} parent=11 // pred_check
          %p224 = pneg %p168
        $region34: #{tpu_custom_call.1} parent=11 // pred_check_branch
          %226 = sbr.rel (%p224) target = $region36
        $region35: #{tpu_custom_call.1} parent=11 // pred_region
          _
        $region36: #{tpu_custom_call.1} parent=11 // pred_fallthru
          _
      $region12: #{tpu_custom_call.1} parent=5 // pred_fallthru
        _
      %p227 = scmp.lt.s32.totalorder %s16, 2
      // Predicated region
      $region37: #{tpu_custom_call.1} parent=5 // pred_check
        %p228 = pneg %p227
      $region38: #{tpu_custom_call.1} parent=5 // pred_check_branch
        %230 = sbr.rel (%p228) target = $region40
      $region39: #{tpu_custom_call.1} parent=5 // pred_region
        // Predicated region
        $region41: #{tpu_custom_call.1} parent=39 // pred_check
          %p231 = pneg %p36
        $region42: #{tpu_custom_call.1} parent=39 // pred_check_branch
          %233 = sbr.rel (%p231) target = $region44
        $region43: #{tpu_custom_call.1} parent=39 // pred_region
          %s234 = smul.u32 32, %s16
          %p235 = scmp.lt.s32.totalorder %s234, 63
          %s236 = scalar_select %p235, %s234, 63
          %s237 = smul.addr %s236, 8
          %s238 = scalar_lea.vmem %s0, %s237
          %s239 = smul.u32 32, %s16
        $region44: #{tpu_custom_call.1} parent=39 // pred_fallthru
          _
      $region40: #{tpu_custom_call.1} parent=5 // pred_fallthru
        _
      %p240 = scmp.le.s32.totalorder 1, %s16
      %p241 = scmp.lt.s32.totalorder %s16, 3
      %p242 = pnand %p240, %p241
      %p243 = pneg %p242
      // Predicated region
      $region45: #{tpu_custom_call.1} parent=5 // pred_check
        _
      $region46: #{tpu_custom_call.1} parent=5 // pred_check_branch
        %245 = sbr.rel (%p242) target = $region48
      $region47: #{tpu_custom_call.1} parent=5 // pred_region
        %s246 = ssub.s32 %s16, 1
        %s247 = smul.u32 32, %s21
        %p248 = scmp.lt.s32.totalorder %s247, 63
        %s249 = scalar_select %p248, %s247, 63
        %s250 = smul.addr %s249, 8
        %s251 = scalar_lea.vmem %s0, %s250
        %p252 = pneg %p42
        %p253 = pneg %p39
        %p254 = pneg %p63
        %p255 = pneg %p60
        %p256 = pneg %p84
        %p257 = pneg %p81
        %p258 = pneg %p105
        %p259 = pneg %p102
        %p260 = pneg %p126
        %p261 = pneg %p123
        %p262 = pneg %p147
        %p263 = pneg %p144
        %p264 = pneg %p168
        %p265 = pneg %p165
        %p266 = pneg %p194
        %p267 = pneg %p191
        %s268 = sand.u32 %s181, 1
        %s269 = scalar_lea.sflag [#allocation3], %s268
        %s270 = sand.u32 %s181, 1
        %s271 = smul.addr %s270, 4
        %s272 = scalar_lea.vmem [#allocation2], %s271
        %s273 = smul.u32 32, %s21
        %p274 = scmp.lt.s32.totalorder %s273, 63
        %s275 = scalar_select %p274, %s273, 63
        %s276 = smul.addr %s275, 8
        %s277 = scalar_lea.vmem %s0, %s276
        %s278 = smul.u32 32, %s21
        %s279 = smul.u32 2, %s21
        %v280 = vld [vmem:[%s277] sm:$0xff]
        %v281 = vld [vmem:[%s277 + $0x8] sm:$0xff]
        %v282 = vld [vmem:[%s277 + $0x10] sm:$0xff]
        %v283 = vld [vmem:[%s277 + $0x18] sm:$0xff]
        %v284 = vld [vmem:[%s277 + $0x20] sm:$0xff]
        %v285 = vld [vmem:[%s277 + $0x28] sm:$0xff]
        %v286 = vld [vmem:[%s277 + $0x30] sm:$0xff]
        %v287 = vld [vmem:[%s277 + $0x38] sm:$0xff]
        %v288 = vld [vmem:[%s277 + $0x40] sm:$0xff]
        %v289 = vld [vmem:[%s277 + $0x48] sm:$0xff]
        %v290 = vld [vmem:[%s277 + $0x50] sm:$0xff]
        %v291 = vld [vmem:[%s277 + $0x58] sm:$0xff]
        %v292 = vld [vmem:[%s277 + $0x60] sm:$0xff]
        %v293 = vld [vmem:[%s277 + $0x68] sm:$0xff]
        %v294 = vld [vmem:[%s277 + $0x70] sm:$0xff]
        %v295 = vld [vmem:[%s277 + $0x78] sm:$0xff]
        %v296 = vld [vmem:[%s277 + $0x80] sm:$0xff]
        %v297 = vld [vmem:[%s277 + $0x88] sm:$0xff]
        %v298 = vld [vmem:[%s277 + $0x90] sm:$0xff]
        %v299 = vld [vmem:[%s277 + $0x98] sm:$0xff]
        %v300 = vld [vmem:[%s277 + $0xa0] sm:$0xff]
        %v301 = vld [vmem:[%s277 + $0xa8] sm:$0xff]
        %v302 = vld [vmem:[%s277 + $0xb0] sm:$0xff]
        %v303 = vld [vmem:[%s277 + $0xb8] sm:$0xff]
        %v304 = vld [vmem:[%s277 + $0xc0] sm:$0xff]
        %v305 = vld [vmem:[%s277 + $0xc8] sm:$0xff]
        %v306 = vld [vmem:[%s277 + $0xd0] sm:$0xff]
        %v307 = vld [vmem:[%s277 + $0xd8] sm:$0xff]
        %v308 = vld [vmem:[%s277 + $0xe0] sm:$0xff]
        %v309 = vld [vmem:[%s277 + $0xe8] sm:$0xff]
        %v310 = vld [vmem:[%s277 + $0xf0] sm:$0xff]
        %v311 = vld [vmem:[%s277 + $0xf8] sm:$0xff]
        %v312 = vld [vmem:[%s1] sm:$0xff]
        %v313 = vld [vmem:[%s1 + $0x8] sm:$0xff]
        %v314 = vld [vmem:[%s2] sm:$0xff]
        %v315 = vld [vmem:[%s2 + $0x8] sm:$0xff]
        %317 = vset.pattern.permute.xlu0 0
        %318 = vperm.xlu0 %317, %v314
        %v319 = vpop.permute.xlu0 %318
        %322 = vset.pattern.permute.xlu0 0
        %323 = vperm.xlu0 %322, %v315
        %v324 = vpop.permute.xlu0 %323
        %vm326 = vcmask 244736
        %v328 = vsel %vm326, %v312, 0
        %v331 = vsel %vm326, %v313, 0
        %v334 = vsel %vm326, %v280, 0
        %v337 = vsel %vm326, %v281, 0
        %v340 = vsel %vm326, %v282, 0
        %v343 = vsel %vm326, %v283, 0
        %v346 = vsel %vm326, %v284, 0
        %v349 = vsel %vm326, %v285, 0
        %v352 = vsel %vm326, %v286, 0
        %v355 = vsel %vm326, %v287, 0
        %v358 = vsel %vm326, %v288, 0
        %v361 = vsel %vm326, %v289, 0
        %v364 = vsel %vm326, %v290, 0
        %v367 = vsel %vm326, %v291, 0
        %v370 = vsel %vm326, %v292, 0
        %v373 = vsel %vm326, %v293, 0
        %v376 = vsel %vm326, %v294, 0
        %v379 = vsel %vm326, %v295, 0
        %v382 = vsel %vm326, %v296, 0
        %v385 = vsel %vm326, %v297, 0
        %v388 = vsel %vm326, %v298, 0
        %v391 = vsel %vm326, %v299, 0
        %v394 = vsel %vm326, %v300, 0
        %v397 = vsel %vm326, %v301, 0
        %v400 = vsel %vm326, %v302, 0
        %v403 = vsel %vm326, %v303, 0
        %v406 = vsel %vm326, %v304, 0
        %v409 = vsel %vm326, %v305, 0
        %v412 = vsel %vm326, %v306, 0
        %v415 = vsel %vm326, %v307, 0
        %v418 = vsel %vm326, %v308, 0
        %v421 = vsel %vm326, %v309, 0
        %v424 = vsel %vm326, %v310, 0
        %v427 = vsel %vm326, %v311, 0
        %429 = vmatpush.xpose.msra.mxu0 %v379
        %430 = vmatpush.xpose.msra.mxu0 %v376
        %431 = vmatpush.xpose.msra.mxu0 %v373
        %432 = vmatpush.xpose.msra.mxu0 %v370
        %433 = vmatpush.xpose.msra.mxu0 %v367
        %434 = vmatpush.xpose.msra.mxu0 %v364
        %435 = vmatpush.xpose.msra.mxu0 %v361
        %436 = vmatpush.xpose.msra.mxu0 %v358
        %437 = vmatpush.xpose.msra.mxu0 %v355
        %438 = vmatpush.xpose.msra.mxu0 %v352
        %439 = vmatpush.xpose.msra.mxu0 %v349
        %440 = vmatpush.xpose.msra.mxu0 %v346
        %441 = vmatpush.xpose.msra.mxu0 %v343
        %442 = vmatpush.xpose.msra.mxu0 %v340
        %443 = vmatpush.xpose.msra.mxu0 %v337
        %444 = vmatpush.xpose.msra.mxu0 %v334
        %445 = vmatmul.f32.gmra.mxu0 %v328
        %v446 = vpop.f32.mrf.mxu0
        %v447 = vadd.f32 %v319, %v446
        %448 = vmatmul.f32.gmra.mxu0 %v331
        %v449 = vpop.f32.mrf.mxu0
        %v450 = vadd.f32 %v324, %v449
        %451 = vdwg.mxu0
        %452 = vmatpush.xpose.msra.mxu0 %v427
        %453 = vmatpush.xpose.msra.mxu0 %v424
        %454 = vmatpush.xpose.msra.mxu0 %v421
        %455 = vmatpush.xpose.msra.mxu0 %v418
        %456 = vmatpush.xpose.msra.mxu0 %v415
        %457 = vmatpush.xpose.msra.mxu0 %v412
        %458 = vmatpush.xpose.msra.mxu0 %v409
        %459 = vmatpush.xpose.msra.mxu0 %v406
        %460 = vmatpush.xpose.msra.mxu0 %v403
        %461 = vmatpush.xpose.msra.mxu0 %v400
        %462 = vmatpush.xpose.msra.mxu0 %v397
        %463 = vmatpush.xpose.msra.mxu0 %v394
        %464 = vmatpush.xpose.msra.mxu0 %v391
        %465 = vmatpush.xpose.msra.mxu0 %v388
        %466 = vmatpush.xpose.msra.mxu0 %v385
        %467 = vmatpush.xpose.msra.mxu0 %v382
        %468 = vmatmul.f32.gmra.mxu0 %v328
        %v469 = vpop.f32.mrf.mxu0
        %v470 = vadd.f32 %v319, %v469
        %471 = vmatmul.f32.gmra.mxu0 %v331
        %v472 = vpop.f32.mrf.mxu0
        %v473 = vadd.f32 %v324, %v472
        %474 = vdwg.mxu0
        %v475 = vmax.f32 %v447, 0.0
        %v476 = vmax.f32 %v470, 0.0
        %v477 = vmax.f32 %v450, 0.0
        %v478 = vmax.f32 %v473, 0.0
        %v479 = vld [vmem:[%s3] sm:$0xff]
        %v480 = vld [vmem:[%s4] sm:$0xff]
        %482 = vset.pattern.permute.xlu0 0
        %483 = vperm.xlu0 %482, %v480
        %v484 = vpop.permute.xlu0 %483
        %vm486 = vcmask 130048
        %v488 = vsel %vm486, %v479, 0
        %490 = vmatpush.msra.mxu0 0.0
        %491 = vmatpush.msra.mxu0 0.0
        %492 = vmatpush.msra.mxu0 0.0
        %493 = vmatpush.msra.mxu0 0.0
        %494 = vmatpush.msra.mxu0 0.0
        %495 = vmatpush.msra.mxu0 0.0
        %496 = vmatpush.msra.mxu0 0.0
        %497 = vmatpush.msra.mxu0 0.0
        %498 = vmatpush.msra.mxu0 0.0
        %499 = vmatpush.msra.mxu0 0.0
        %500 = vmatpush.msra.mxu0 0.0
        %501 = vmatpush.msra.mxu0 0.0
        %502 = vmatpush.msra.mxu0 0.0
        %503 = vmatpush.msra.mxu0 0.0
        %504 = vmatpush.msra.mxu0 %v477
        %505 = vmatpush.msra.mxu0 %v475
        %506 = vmatmul.f32.gmra.mxu0 %v488
        %v507 = vpop.f32.mrf.mxu0
        %v508 = vadd.f32 %v484, %v507
        %509 = vdwg.mxu0
        %510 = vmatpush.msra.mxu0 0.0
        %511 = vmatpush.msra.mxu0 0.0
        %512 = vmatpush.msra.mxu0 0.0
        %513 = vmatpush.msra.mxu0 0.0
        %514 = vmatpush.msra.mxu0 0.0
        %515 = vmatpush.msra.mxu0 0.0
        %516 = vmatpush.msra.mxu0 0.0
        %517 = vmatpush.msra.mxu0 0.0
        %518 = vmatpush.msra.mxu0 0.0
        %519 = vmatpush.msra.mxu0 0.0
        %520 = vmatpush.msra.mxu0 0.0
        %521 = vmatpush.msra.mxu0 0.0
        %522 = vmatpush.msra.mxu0 0.0
        %523 = vmatpush.msra.mxu0 0.0
        %524 = vmatpush.msra.mxu0 %v478
        %525 = vmatpush.msra.mxu0 %v476
        %526 = vmatmul.f32.gmra.mxu0 %v488
        %v527 = vpop.f32.mrf.mxu0
        %v528 = vadd.f32 %v484, %v527
        %529 = vdwg.mxu0
        %v530 = vmax.f32 %v508, 0.0
        %v531 = vmax.f32 %v528, 0.0
        %v532 = vld [vmem:[%s5] sm:$0x3]
        %v533 = vld [vmem:[%s6] sm:$0x3]
        %535 = vset.pattern.permute.xlu0 0
        %536 = vperm.xlu0 %535, %v533
        %v537 = vpop.permute.xlu0 %536
        %vm539 = vcmask 64512
        %v541 = vsel %vm539, %v532, 0
        %543 = vmatpush.msra.mxu0 0.0
        %544 = vmatpush.msra.mxu0 0.0
        %545 = vmatpush.msra.mxu0 0.0
        %546 = vmatpush.msra.mxu0 0.0
        %547 = vmatpush.msra.mxu0 0.0
        %548 = vmatpush.msra.mxu0 0.0
        %549 = vmatpush.msra.mxu0 0.0
        %550 = vmatpush.msra.mxu0 0.0
        %551 = vmatpush.msra.mxu0 0.0
        %552 = vmatpush.msra.mxu0 0.0
        %553 = vmatpush.msra.mxu0 0.0
        %554 = vmatpush.msra.mxu0 0.0
        %555 = vmatpush.msra.mxu0 0.0
        %556 = vmatpush.msra.mxu0 0.0
        %557 = vmatpush.msra.mxu0 0.0
        %558 = vmatpush.msra.mxu0 %v530
        %559 = vmatmul.f32.gmra.mxu0 %v541
        %v560 = vpop.f32.mrf.mxu0
        %v561 = vadd.f32 %v537, %v560
        %562 = vdwg.mxu0
        %563 = vmatpush.msra.mxu0 0.0
        %564 = vmatpush.msra.mxu0 0.0
        %565 = vmatpush.msra.mxu0 0.0
        %566 = vmatpush.msra.mxu0 0.0
        %567 = vmatpush.msra.mxu0 0.0
        %568 = vmatpush.msra.mxu0 0.0
        %569 = vmatpush.msra.mxu0 0.0
        %570 = vmatpush.msra.mxu0 0.0
        %571 = vmatpush.msra.mxu0 0.0
        %572 = vmatpush.msra.mxu0 0.0
        %573 = vmatpush.msra.mxu0 0.0
        %574 = vmatpush.msra.mxu0 0.0
        %575 = vmatpush.msra.mxu0 0.0
        %576 = vmatpush.msra.mxu0 0.0
        %577 = vmatpush.msra.mxu0 0.0
        %578 = vmatpush.msra.mxu0 %v531
        %579 = vmatmul.f32.gmra.mxu0 %v541
        %v580 = vpop.f32.mrf.mxu0
        %v581 = vadd.f32 %v537, %v580
        %582 = vdwg.mxu0
        %v585 = vrot.slane %v581, 6
        %vm586 = vcmask 1041408
        %v587 = vsel %vm586, %v561, %v585
        %589 = vst [vmem:[%s272] sm:$0xf] %v587
        %s590 = sand.u32 %s181, 1
        %s591 = scalar_lea.sflag [#allocation3], %s590
        %s592 = sand.u32 %s181, 1
        %s593 = smul.addr %s592, 4
        %s594 = scalar_lea.vmem [#allocation2], %s593
        // Predicated region
        $region49: #{tpu_custom_call.1} parent=47 // pred_check
          %p595 = pneg %p191
        $region50: #{tpu_custom_call.1} parent=47 // pred_check_branch
          %597 = sbr.rel (%p595) target = $region52
        $region51: #{tpu_custom_call.1} parent=47 // pred_region
          %s598 = smul.u32 2, %s21
          %600 = vsyncadd %s591, 0
          %s601 = smul.addr %s598, 2
          %s602 = scalar_lea.hbm %s7, %s601
          %s604 = sshll.u32 %s594, 4
          %s605 = int_to_ptr.vmem [resolvable:$true] %s604
          %s606 = sshll.u32 %s602, 4
          %s607 = int_to_ptr.hbm [resolvable:$true] %s606
          %609 = dma.vmem_to_hbm [thread:$0]  %s605, 64, %s607, %s591
        $region52: #{tpu_custom_call.1} parent=47 // pred_fallthru
          _
      $region48: #{tpu_custom_call.1} parent=5 // pred_fallthru
        _
      %p610 = scmp.le.s32.totalorder 2, %s16
      // Predicated region
      $region53: #{tpu_custom_call.1} parent=5 // pred_check
        %p611 = pneg %p610
      $region54: #{tpu_custom_call.1} parent=5 // pred_check_branch
        %613 = sbr.rel (%p611) target = $region56
      $region55: #{tpu_custom_call.1} parent=5 // pred_region
        %s614 = ssub.s32 %s16, 2
        // Predicated region
        $region57: #{tpu_custom_call.1} parent=55 // pred_check
          %p615 = pneg %p197
        $region58: #{tpu_custom_call.1} parent=55 // pred_check_branch
          %617 = sbr.rel (%p615) target = $region60
        $region59: #{tpu_custom_call.1} parent=55 // pred_region
          %s618 = sand.u32 %s182, 1
          %s619 = scalar_lea.sflag [#allocation3], %s618
          %s620 = sand.u32 %s182, 1
          %s621 = smul.addr %s620, 4
          %s622 = scalar_lea.vmem [#allocation2], %s621
          %624 = dma.done %s619, 64
        $region60: #{tpu_custom_call.1} parent=55 // pred_fallthru
          _
      $region56: #{tpu_custom_call.1} parent=5 // pred_fallthru
        _
    $region6: #{tpu_custom_call.1} parent=1 // loop_footer
      %s20 = sadd.s32 1, %s16
    $region7: #{tpu_custom_call.1} parent=1 // loop_footer_branch
      %15 = sbr.rel target = $region3
    $region8: #{tpu_custom_call.1} parent=1 // loop_exit
      _
    %625 = vsyncpa [#allocation3], 1
    %s626 = scalar_lea.sflag [#allocation3], 1
    %627 = vsyncpa %s626, 1

</llo_original>
